<compile_context>
chip_gen: v5e
topology: v5e:2x2
jax: 0.10.0
libtpu: 0.0.40
codegen_flags: <defaults>
</compile_context>

<pallas_src>
import functools

import jax
import jax.numpy as jnp
from jax.experimental import pallas as pl
from jax.experimental.pallas import tpu as pltpu


def _rnn_block_kernel(u_ref, h0_ref, whh_t_ref, hid_ref, h_scratch,
                      *, t_blk, alpha):
    # Initialize the recurrent state from the provided initial hidden.
    @pl.when(pl.program_id(0) == 0)
    def _():
        h_scratch[...] = h0_ref[...].astype(jnp.float32)

    whh_t = whh_t_ref[...]                      # (n_hid, n_hid) = W_hh^T, resident
    u = u_ref[...].astype(jnp.float32)          # (B, t_blk, n_hid) precomputed input term
    h = h_scratch[...]                          # (B, n_hid) fp32

    hs = []
    for i in range(t_blk):                      # fully unrolled serial recurrence
        pre = u[:, i, :] + jnp.dot(h, whh_t, preferred_element_type=jnp.float32)
        h_cand = jnp.maximum(pre, 0.0)          # RNNCell(relu)
        h = h + alpha * (h_cand - h)            # (1-alpha)*h + alpha*h_cand
        hs.append(h)

    # One dense (B, t_blk, n_hid) store per grid step.
    hid_ref[...] = jnp.stack(hs, axis=1).astype(hid_ref.dtype)
    h_scratch[...] = h


def recurrent_net_forward(input_signal, hidden, params, t_constant):
    """input_signal: (B, L, n_in), hidden: (B, n_hid).
    Returns (hidden_list (B, L, n_hid), output_list (B, L, n_out), final hidden)."""
    B, L, n_in = input_signal.shape
    w_in, b_in, w_ih, w_hh, b_ih, b_hh, w_out, b_out = params
    n_hid = w_hh.shape[0]
    n_out = w_out.shape[0]

    # --- hoisted input projection: one MXU-friendly batched matmul ---
    xp = jnp.dot(input_signal.reshape(B * L, n_in), w_in.T) + b_in       # in_layer
    u = jnp.dot(xp, w_ih.T) + (b_ih + b_hh)                              # RNNCell input term
    u = u.reshape(B, L, n_hid)

    # --- time blocking (pad L to a multiple of T_BLK; padded steps are sliced off) ---
    t_blk = 8
    for cand in (32, 16):
        if L % cand == 0:
            t_blk = cand
            break
    l_pad = pl.cdiv(L, t_blk) * t_blk
    if l_pad != L:
        u = jnp.pad(u, ((0, 0), (0, l_pad - L), (0, 0)))

    whh_t = w_hh.T          # one-time transpose; loop-invariant inside the kernel

    kernel = functools.partial(_rnn_block_kernel, t_blk=t_blk,
                               alpha=float(t_constant))

    grid_spec = pltpu.PrefetchScalarGridSpec(
        num_scalar_prefetch=0,
        grid=(l_pad // t_blk,),
        in_specs=[
            pl.BlockSpec((B, t_blk, n_hid), lambda t: (0, t, 0)),   # U slab at block t
            pl.BlockSpec((B, n_hid), lambda t: (0, 0)),             # h0 (resident)
            pl.BlockSpec((n_hid, n_hid), lambda t: (0, 0)),         # W_hh^T (resident)
        ],
        out_specs=pl.BlockSpec((B, t_blk, n_hid), lambda t: (0, t, 0)),
        scratch_shapes=[pltpu.VMEM((B, n_hid), jnp.float32)],
    )

    hid_full = pl.pallas_call(
        kernel,
        out_shape=jax.ShapeDtypeStruct((B, l_pad, n_hid), jnp.float32),
        grid_spec=grid_spec,
        compiler_params=pltpu.CompilerParams(
            dimension_semantics=("arbitrary",),        # time recurrence is serial
            vmem_limit_bytes=48 * 1024 * 1024,         # safe on v5e/v6e/v7x
        ),
    )(u, hidden, whh_t)

    hidden_list = hid_full[:, :L, :]

    # --- hoisted output projection: one big batched matmul ---
    output_list = (jnp.dot(hidden_list.reshape(B * L, n_hid), w_out.T)
                   + b_out).reshape(B, L, n_out)

    h_final = hidden_list[:, L - 1, :]
    return hidden_list, output_list, h_final


def _reference_forward(input_signal, hidden, params, t_constant):
    """Pure-JAX reference mirroring the PyTorch forward exactly."""
    w_in, b_in, w_ih, w_hh, b_ih, b_hh, w_out, b_out = params
    alpha = jnp.float32(t_constant)
    x_tmajor = jnp.transpose(input_signal, (1, 0, 2))

    def step(h, x_t):
        xp = x_t @ w_in.T + b_in
        h_cand = jax.nn.relu(xp @ w_ih.T + b_ih + h @ w_hh.T + b_hh)
        h = (1.0 - alpha) * h + alpha * h_cand
        out = h @ w_out.T + b_out
        return h, (h, out)

    h_final, (h_list, o_list) = jax.lax.scan(step, hidden, x_tmajor)
    return (jnp.transpose(h_list, (1, 0, 2)),
            jnp.transpose(o_list, (1, 0, 2)),
            h_final)


def init_params(key, n_in, n_hid, n_out):
    ks = jax.random.split(key, 8)

    def unif(k, shape, fan_in):
        b = 1.0 / float(fan_in) ** 0.5
        return jax.random.uniform(k, shape, jnp.float32, -b, b)

    w_in = unif(ks[0], (n_hid, n_in), n_in)      # in_layer: Linear(n_in, n_hid)
    b_in = unif(ks[1], (n_hid,), n_in)
    w_ih = unif(ks[2], (n_hid, n_hid), n_hid)    # RNNCell(n_hid, n_hid)
    w_hh = unif(ks[3], (n_hid, n_hid), n_hid)
    b_ih = unif(ks[4], (n_hid,), n_hid)
    b_hh = unif(ks[5], (n_hid,), n_hid)
    w_out = unif(ks[6], (n_out, n_hid), n_hid)   # out_layer: Linear(n_hid, n_out)
    b_out = unif(ks[7], (n_out,), n_hid)
    return (w_in, b_in, w_ih, w_hh, b_ih, b_hh, w_out, b_out)


if __name__ == "__main__":
    B, L, n_in, n_hid, n_out = 2, 8, 4, 32, 4
    t_constant = 0.2

    key = jax.random.PRNGKey(0)
    k_x, k_h, k_p = jax.random.split(key, 3)
    x = jax.random.normal(k_x, (B, L, n_in), jnp.float32)
    h0 = jax.random.normal(k_h, (B, n_hid), jnp.float32)
    params = init_params(k_p, n_in, n_hid, n_out)

    hid_list, out_list, h_final = recurrent_net_forward(x, h0, params, t_constant)
    jax.block_until_ready((hid_list, out_list, h_final))

    # Correctness check against a pure-JAX reference of the PyTorch forward.
    ref_hid, ref_out, ref_hf = _reference_forward(x, h0, params, t_constant)
    assert jnp.allclose(hid_list, ref_hid, atol=2e-5, rtol=2e-5)
    assert jnp.allclose(out_list, ref_out, atol=2e-5, rtol=2e-5)
    assert jnp.allclose(h_final, ref_hf, atol=2e-5, rtol=2e-5)

    print("KERNEL_OK")
</pallas_src>

<mosaic_0001>
module attributes {stable_mosaic.version = 11 : i64} {
  func.func @_rnn_block_kernel(%arg0: i32, %arg1: memref<2x8x32xf32, #tpu.memory_space<vmem>>, %arg2: memref<2x32xf32, #tpu.memory_space<vmem>>, %arg3: memref<32x32xf32, #tpu.memory_space<vmem>>, %arg4: memref<2x8x32xf32, #tpu.memory_space<vmem>>, %arg5: memref<2x32xf32, #tpu.memory_space<vmem>>) attributes {dimension_semantics = [#tpu.dimension_semantics<arbitrary>], iteration_bounds = array<i64: 1>, scalar_prefetch = 0 : i64, scratch_operands = 1 : i64, tpu.core_type = #tpu.core_type<tc>, window_params = [{transform_indices = @transform_0, window_bounds = array<i64: 2, 8, 32>}, {pipeline_mode = #tpu.pipeline_mode<synchronous>, transform_indices = @transform_1, window_bounds = array<i64: 2, 32>}, {pipeline_mode = #tpu.pipeline_mode<synchronous>, transform_indices = @transform_2, window_bounds = array<i64: 32, 32>}, {transform_indices = @transform_3, window_bounds = array<i64: 2, 8, 32>}]} {
    %c0_i32 = arith.constant 0 : i32
    %0 = arith.cmpi eq, %arg0, %c0_i32 : i32
    %1 = arith.extui %0 : i1 to i32
    %c0_i32_0 = arith.constant 0 : i32
    %2 = arith.cmpi ne, %1, %c0_i32_0 : i32
    scf.if %2 {
      %c0_35 = arith.constant 0 : index
      %c0_36 = arith.constant 0 : index
      %97 = vector.load %arg2[%c0_35, %c0_36] : memref<2x32xf32, #tpu.memory_space<vmem>>, vector<2x32xf32>
      %c0_37 = arith.constant 0 : index
      %c0_38 = arith.constant 0 : index
      %98 = vector.load %arg5[%c0_37, %c0_38] : memref<2x32xf32, #tpu.memory_space<vmem>>, vector<2x32xf32>
      tpu.vector_store %arg5[%c0_37, %c0_38], %97 {strides = array<i32>} : memref<2x32xf32, #tpu.memory_space<vmem>>, vector<2x32xf32>,
    } else {
    }
    %c0 = arith.constant 0 : index
    %c0_1 = arith.constant 0 : index
    %3 = vector.load %arg3[%c0, %c0_1] : memref<32x32xf32, #tpu.memory_space<vmem>>, vector<32x32xf32>
    %c0_2 = arith.constant 0 : index
    %c0_3 = arith.constant 0 : index
    %c0_4 = arith.constant 0 : index
    %4 = vector.load %arg1[%c0_2, %c0_3, %c0_4] : memref<2x8x32xf32, #tpu.memory_space<vmem>>, vector<2x8x32xf32>
    %c0_5 = arith.constant 0 : index
    %c0_6 = arith.constant 0 : index
    %5 = vector.load %arg5[%c0_5, %c0_6] : memref<2x32xf32, #tpu.memory_space<vmem>>, vector<2x32xf32>
    %6 = vector.extract_strided_slice %4 {offsets = [0, 0, 0], sizes = [2, 1, 32], strides = [1, 1, 1]} : vector<2x8x32xf32> to vector<2x1x32xf32>
    %7 = vector.shape_cast %6 : vector<2x1x32xf32> to vector<2x32xf32>
    %cst = arith.constant dense<0.000000e+00> : vector<2x32xf32>
    %8 = tpu.matmul %5, %3, %cst {dimension_numbers = #tpu.dot_dimension_numbers<[1], [0], [0], [1], [0, 0, 1, 1], [], []>} : vector<2x32xf32>, vector<32x32xf32>, vector<2x32xf32> -> vector<2x32xf32>
    %9 = arith.addf %7, %8 : vector<2x32xf32>
    %cst_7 = arith.constant 0.000000e+00 : f32
    %10 = vector.broadcast %cst_7 : f32 to vector<2x32xf32>
    %11 = arith.maximumf %9, %10 : vector<2x32xf32>
    %12 = arith.subf %11, %5 : vector<2x32xf32>
    %cst_8 = arith.constant 2.000000e-01 : f32
    %13 = vector.broadcast %cst_8 : f32 to vector<2x32xf32>
    %14 = arith.mulf %13, %12 : vector<2x32xf32>
    %15 = arith.addf %5, %14 : vector<2x32xf32>
    %16 = vector.extract_strided_slice %4 {offsets = [0, 1, 0], sizes = [2, 1, 32], strides = [1, 1, 1]} : vector<2x8x32xf32> to vector<2x1x32xf32>
    %17 = vector.shape_cast %16 : vector<2x1x32xf32> to vector<2x32xf32>
    %cst_9 = arith.constant dense<0.000000e+00> : vector<2x32xf32>
    %18 = tpu.matmul %15, %3, %cst_9 {dimension_numbers = #tpu.dot_dimension_numbers<[1], [0], [0], [1], [0, 0, 1, 1], [], []>} : vector<2x32xf32>, vector<32x32xf32>, vector<2x32xf32> -> vector<2x32xf32>
    %19 = arith.addf %17, %18 : vector<2x32xf32>
    %cst_10 = arith.constant 0.000000e+00 : f32
    %20 = vector.broadcast %cst_10 : f32 to vector<2x32xf32>
    %21 = arith.maximumf %19, %20 : vector<2x32xf32>
    %22 = arith.subf %21, %15 : vector<2x32xf32>
    %cst_11 = arith.constant 2.000000e-01 : f32
    %23 = vector.broadcast %cst_11 : f32 to vector<2x32xf32>
    %24 = arith.mulf %23, %22 : vector<2x32xf32>
    %25 = arith.addf %15, %24 : vector<2x32xf32>
    %26 = vector.extract_strided_slice %4 {offsets = [0, 2, 0], sizes = [2, 1, 32], strides = [1, 1, 1]} : vector<2x8x32xf32> to vector<2x1x32xf32>
    %27 = vector.shape_cast %26 : vector<2x1x32xf32> to vector<2x32xf32>
    %cst_12 = arith.constant dense<0.000000e+00> : vector<2x32xf32>
    %28 = tpu.matmul %25, %3, %cst_12 {dimension_numbers = #tpu.dot_dimension_numbers<[1], [0], [0], [1], [0, 0, 1, 1], [], []>} : vector<2x32xf32>, vector<32x32xf32>, vector<2x32xf32> -> vector<2x32xf32>
    %29 = arith.addf %27, %28 : vector<2x32xf32>
    %cst_13 = arith.constant 0.000000e+00 : f32
    %30 = vector.broadcast %cst_13 : f32 to vector<2x32xf32>
    %31 = arith.maximumf %29, %30 : vector<2x32xf32>
    %32 = arith.subf %31, %25 : vector<2x32xf32>
    %cst_14 = arith.constant 2.000000e-01 : f32
    %33 = vector.broadcast %cst_14 : f32 to vector<2x32xf32>
    %34 = arith.mulf %33, %32 : vector<2x32xf32>
    %35 = arith.addf %25, %34 : vector<2x32xf32>
    %36 = vector.extract_strided_slice %4 {offsets = [0, 3, 0], sizes = [2, 1, 32], strides = [1, 1, 1]} : vector<2x8x32xf32> to vector<2x1x32xf32>
    %37 = vector.shape_cast %36 : vector<2x1x32xf32> to vector<2x32xf32>
    %cst_15 = arith.constant dense<0.000000e+00> : vector<2x32xf32>
    %38 = tpu.matmul %35, %3, %cst_15 {dimension_numbers = #tpu.dot_dimension_numbers<[1], [0], [0], [1], [0, 0, 1, 1], [], []>} : vector<2x32xf32>, vector<32x32xf32>, vector<2x32xf32> -> vector<2x32xf32>
    %39 = arith.addf %37, %38 : vector<2x32xf32>
    %cst_16 = arith.constant 0.000000e+00 : f32
    %40 = vector.broadcast %cst_16 : f32 to vector<2x32xf32>
    %41 = arith.maximumf %39, %40 : vector<2x32xf32>
    %42 = arith.subf %41, %35 : vector<2x32xf32>
    %cst_17 = arith.constant 2.000000e-01 : f32
    %43 = vector.broadcast %cst_17 : f32 to vector<2x32xf32>
    %44 = arith.mulf %43, %42 : vector<2x32xf32>
    %45 = arith.addf %35, %44 : vector<2x32xf32>
    %46 = vector.extract_strided_slice %4 {offsets = [0, 4, 0], sizes = [2, 1, 32], strides = [1, 1, 1]} : vector<2x8x32xf32> to vector<2x1x32xf32>
    %47 = vector.shape_cast %46 : vector<2x1x32xf32> to vector<2x32xf32>
    %cst_18 = arith.constant dense<0.000000e+00> : vector<2x32xf32>
    %48 = tpu.matmul %45, %3, %cst_18 {dimension_numbers = #tpu.dot_dimension_numbers<[1], [0], [0], [1], [0, 0, 1, 1], [], []>} : vector<2x32xf32>, vector<32x32xf32>, vector<2x32xf32> -> vector<2x32xf32>
    %49 = arith.addf %47, %48 : vector<2x32xf32>
    %cst_19 = arith.constant 0.000000e+00 : f32
    %50 = vector.broadcast %cst_19 : f32 to vector<2x32xf32>
    %51 = arith.maximumf %49, %50 : vector<2x32xf32>
    %52 = arith.subf %51, %45 : vector<2x32xf32>
    %cst_20 = arith.constant 2.000000e-01 : f32
    %53 = vector.broadcast %cst_20 : f32 to vector<2x32xf32>
    %54 = arith.mulf %53, %52 : vector<2x32xf32>
    %55 = arith.addf %45, %54 : vector<2x32xf32>
    %56 = vector.extract_strided_slice %4 {offsets = [0, 5, 0], sizes = [2, 1, 32], strides = [1, 1, 1]} : vector<2x8x32xf32> to vector<2x1x32xf32>
    %57 = vector.shape_cast %56 : vector<2x1x32xf32> to vector<2x32xf32>
    %cst_21 = arith.constant dense<0.000000e+00> : vector<2x32xf32>
    %58 = tpu.matmul %55, %3, %cst_21 {dimension_numbers = #tpu.dot_dimension_numbers<[1], [0], [0], [1], [0, 0, 1, 1], [], []>} : vector<2x32xf32>, vector<32x32xf32>, vector<2x32xf32> -> vector<2x32xf32>
    %59 = arith.addf %57, %58 : vector<2x32xf32>
    %cst_22 = arith.constant 0.000000e+00 : f32
    %60 = vector.broadcast %cst_22 : f32 to vector<2x32xf32>
    %61 = arith.maximumf %59, %60 : vector<2x32xf32>
    %62 = arith.subf %61, %55 : vector<2x32xf32>
    %cst_23 = arith.constant 2.000000e-01 : f32
    %63 = vector.broadcast %cst_23 : f32 to vector<2x32xf32>
    %64 = arith.mulf %63, %62 : vector<2x32xf32>
    %65 = arith.addf %55, %64 : vector<2x32xf32>
    %66 = vector.extract_strided_slice %4 {offsets = [0, 6, 0], sizes = [2, 1, 32], strides = [1, 1, 1]} : vector<2x8x32xf32> to vector<2x1x32xf32>
    %67 = vector.shape_cast %66 : vector<2x1x32xf32> to vector<2x32xf32>
    %cst_24 = arith.constant dense<0.000000e+00> : vector<2x32xf32>
    %68 = tpu.matmul %65, %3, %cst_24 {dimension_numbers = #tpu.dot_dimension_numbers<[1], [0], [0], [1], [0, 0, 1, 1], [], []>} : vector<2x32xf32>, vector<32x32xf32>, vector<2x32xf32> -> vector<2x32xf32>
    %69 = arith.addf %67, %68 : vector<2x32xf32>
    %cst_25 = arith.constant 0.000000e+00 : f32
    %70 = vector.broadcast %cst_25 : f32 to vector<2x32xf32>
    %71 = arith.maximumf %69, %70 : vector<2x32xf32>
    %72 = arith.subf %71, %65 : vector<2x32xf32>
    %cst_26 = arith.constant 2.000000e-01 : f32
    %73 = vector.broadcast %cst_26 : f32 to vector<2x32xf32>
    %74 = arith.mulf %73, %72 : vector<2x32xf32>
    %75 = arith.addf %65, %74 : vector<2x32xf32>
    %76 = vector.extract_strided_slice %4 {offsets = [0, 7, 0], sizes = [2, 1, 32], strides = [1, 1, 1]} : vector<2x8x32xf32> to vector<2x1x32xf32>
    %77 = vector.shape_cast %76 : vector<2x1x32xf32> to vector<2x32xf32>
    %cst_27 = arith.constant dense<0.000000e+00> : vector<2x32xf32>
    %78 = tpu.matmul %75, %3, %cst_27 {dimension_numbers = #tpu.dot_dimension_numbers<[1], [0], [0], [1], [0, 0, 1, 1], [], []>} : vector<2x32xf32>, vector<32x32xf32>, vector<2x32xf32> -> vector<2x32xf32>
    %79 = arith.addf %77, %78 : vector<2x32xf32>
    %cst_28 = arith.constant 0.000000e+00 : f32
    %80 = vector.broadcast %cst_28 : f32 to vector<2x32xf32>
    %81 = arith.maximumf %79, %80 : vector<2x32xf32>
    %82 = arith.subf %81, %75 : vector<2x32xf32>
    %cst_29 = arith.constant 2.000000e-01 : f32
    %83 = vector.broadcast %cst_29 : f32 to vector<2x32xf32>
    %84 = arith.mulf %83, %82 : vector<2x32xf32>
    %85 = arith.addf %75, %84 : vector<2x32xf32>
    %86 = vector.shape_cast %15 : vector<2x32xf32> to vector<2x1x32xf32>
    %87 = vector.shape_cast %25 : vector<2x32xf32> to vector<2x1x32xf32>
    %88 = vector.shape_cast %35 : vector<2x32xf32> to vector<2x1x32xf32>
    %89 = vector.shape_cast %45 : vector<2x32xf32> to vector<2x1x32xf32>
    %90 = vector.shape_cast %55 : vector<2x32xf32> to vector<2x1x32xf32>
    %91 = vector.shape_cast %65 : vector<2x32xf32> to vector<2x1x32xf32>
    %92 = vector.shape_cast %75 : vector<2x32xf32> to vector<2x1x32xf32>
    %93 = vector.shape_cast %85 : vector<2x32xf32> to vector<2x1x32xf32>
    %94 = tpu.concatenate %86, %87, %88, %89, %90, %91, %92, %93 in 1 : vector<2x1x32xf32>, vector<2x1x32xf32>, vector<2x1x32xf32>, vector<2x1x32xf32>, vector<2x1x32xf32>, vector<2x1x32xf32>, vector<2x1x32xf32>, vector<2x1x32xf32> -> vector<2x8x32xf32>
    %c0_30 = arith.constant 0 : index
    %c0_31 = arith.constant 0 : index
    %c0_32 = arith.constant 0 : index
    %95 = vector.load %arg4[%c0_30, %c0_31, %c0_32] : memref<2x8x32xf32, #tpu.memory_space<vmem>>, vector<2x8x32xf32>
    tpu.vector_store %arg4[%c0_30, %c0_31, %c0_32], %94 {strides = array<i32>} : memref<2x8x32xf32, #tpu.memory_space<vmem>>, vector<2x8x32xf32>,
    %c0_33 = arith.constant 0 : index
    %c0_34 = arith.constant 0 : index
    %96 = vector.load %arg5[%c0_33, %c0_34] : memref<2x32xf32, #tpu.memory_space<vmem>>, vector<2x32xf32>
    tpu.vector_store %arg5[%c0_33, %c0_34], %85 {strides = array<i32>} : memref<2x32xf32, #tpu.memory_space<vmem>>, vector<2x32xf32>,
    return
  }
  func.func @transform_0(%arg0: i32) -> (i32, i32, i32) {
    %c0_i32 = arith.constant 0 : i32
    %c0_i32_0 = arith.constant 0 : i32
    %c0_i32_1 = arith.constant 0 : i32
    return %c0_i32, %arg0, %c0_i32_0 : i32, i32, i32
  }
  func.func @transform_1(%arg0: i32) -> (i32, i32) {
    %c0_i32 = arith.constant 0 : i32
    %c0_i32_0 = arith.constant 0 : i32
    %c0_i32_1 = arith.constant 0 : i32
    return %c0_i32, %c0_i32_0 : i32, i32
  }
  func.func @transform_2(%arg0: i32) -> (i32, i32) {
    %c0_i32 = arith.constant 0 : i32
    %c0_i32_0 = arith.constant 0 : i32
    %c0_i32_1 = arith.constant 0 : i32
    return %c0_i32, %c0_i32_0 : i32, i32
  }
  func.func @transform_3(%arg0: i32) -> (i32, i32, i32) {
    %c0_i32 = arith.constant 0 : i32
    %c0_i32_0 = arith.constant 0 : i32
    %c0_i32_1 = arith.constant 0 : i32
    return %c0_i32, %arg0, %c0_i32_0 : i32, i32, i32
  }
}

</mosaic_0001>

<llo_original>
// kernel: tpu_custom_call.1
$region0: #{tpu_custom_call.1}
  #allocation0 [shape = 'u32[]', space=smem, size = 0x4, offset = 0x4, fixed_abs, tag = 'smem constant byte address 0x4 - core index']
  #allocation1 [shape = 'u32[72,128]{1,0:T(1,128)}', space=vmem, size = 0x9000, scoped, tag = 'internal scratch']
  #allocation2 [shape = 'f32[2,32]{1,0:T(2,128)}', space=vmem, size = 0x400, scoped, tag = 'scratch operand']
  %s0 = inlined_call_operand.hbm [shape: f32[2,8,32], index: 0, kind: input, shape index: {}]
  %s1 = inlined_call_operand.hbm [shape: f32[2,32], index: 1, kind: input, shape index: {}]
  %s2 = inlined_call_operand.hbm [shape: f32[32,32], index: 2, kind: input, shape index: {}]
  %s3 = inlined_call_operand.hbm [shape: f32[2,8,32], index: 3, kind: output, shape index: {}]
  %s4 = sld [smem:[#allocation0]]
  $region38: #{tpu_custom_call.1} parent=0
    _
  %s6 = ssub.s32 1, %s4
  %s7 = scalar_select 0, %s6, %s4
  $region1: #{tpu_custom_call.1} parent=0
    #allocation3 [shape = 'u8[8192]{0}', space=vmem, size = 0x2000, scoped, tag = 'input window, operand 0, single buffered']
    #allocation4 [shape = 's32[1]{0}', space=sflag, size = 0x4, scoped, tag = 'scoped memory for tpu_custom_call.1']
    #allocation5 [shape = 's32[1]{0}', space=sflag, size = 0x4, scoped, tag = 'scoped memory for tpu_custom_call.1']
    #allocation6 [shape = 'u8[1024]{0}', space=vmem, size = 0x400, scoped, tag = 'input window, operand 1, single buffered']
    #allocation7 [shape = 's32[1]{0}', space=sflag, size = 0x4, scoped, tag = 'scoped memory for tpu_custom_call.1']
    #allocation8 [shape = 'u8[16384]{0}', space=vmem, size = 0x4000, scoped, tag = 'input window, operand 2, single buffered']
    #allocation9 [shape = 'u8[8192]{0}', space=vmem, size = 0x2000, scoped, tag = 'output window, operand 0, single buffered']
    %8 = vsyncpa [#allocation4], 0
    %9 = vsyncpa [#allocation7], 0
    %10 = vsyncpa [#allocation5], 0
    // Predicated region
    $region2: #{tpu_custom_call.1} parent=1 // pred_check
      _
    $region3: #{tpu_custom_call.1} parent=1 // pred_check_branch
      %12 = sbr.rel (0) target = $region5
    $region4: #{tpu_custom_call.1} parent=1 // pred_region
      %14 = vsyncadd [#allocation4], 0
      %s15 = sshll.u32 %s0, 4
      %s16 = int_to_ptr.hbm [resolvable:$true] %s15
      %s17 = sshll.u32 [#allocation3], 4
      %s18 = int_to_ptr.vmem [resolvable:$true] %s17
      %23 = dma.hbm_to_vmem [thread:$0]  %s16, 256, %s18, [#allocation4], 128, 128, 8
    $region5: #{tpu_custom_call.1} parent=1 // pred_fallthru
      _
    // Predicated region
    $region6: #{tpu_custom_call.1} parent=1 // pred_check
      _
    $region7: #{tpu_custom_call.1} parent=1 // pred_check_branch
      %25 = sbr.rel (0) target = $region9
    $region8: #{tpu_custom_call.1} parent=1 // pred_region
      %27 = vsyncadd [#allocation7], 0
      %s29 = sshll.u32 %s1, 4
      %s30 = int_to_ptr.hbm [resolvable:$true] %s29
      %s31 = sshll.u32 [#allocation6], 4
      %s32 = int_to_ptr.vmem [resolvable:$true] %s31
      %34 = dma.hbm_to_vmem [thread:$0]  %s30, 32, %s32, [#allocation7]
    $region9: #{tpu_custom_call.1} parent=1 // pred_fallthru
      _
    // Predicated region
    $region10: #{tpu_custom_call.1} parent=1 // pred_check
      _
    $region11: #{tpu_custom_call.1} parent=1 // pred_check_branch
      %36 = sbr.rel (0) target = $region13
    $region12: #{tpu_custom_call.1} parent=1 // pred_region
      %38 = vsyncadd [#allocation7], 0
      %s39 = sshll.u32 %s2, 4
      %s40 = int_to_ptr.hbm [resolvable:$true] %s39
      %s41 = sshll.u32 [#allocation8], 4
      %s42 = int_to_ptr.vmem [resolvable:$true] %s41
      %47 = dma.hbm_to_vmem [thread:$0]  %s40, 512, %s42, [#allocation7], 128, 128, 8
    $region13: #{tpu_custom_call.1} parent=1 // pred_fallthru
      _
    // Predicated region
    $region14: #{tpu_custom_call.1} parent=1 // pred_check
      _
    $region15: #{tpu_custom_call.1} parent=1 // pred_check_branch
      %49 = sbr.rel (0) target = $region17
    $region16: #{tpu_custom_call.1} parent=1 // pred_region
      %51 = dma.done [#allocation4], 256
    $region17: #{tpu_custom_call.1} parent=1 // pred_fallthru
      _
    // Predicated region
    $region18: #{tpu_custom_call.1} parent=1 // pred_check
      _
    $region19: #{tpu_custom_call.1} parent=1 // pred_check_branch
      %53 = sbr.rel (0) target = $region21
    $region20: #{tpu_custom_call.1} parent=1 // pred_region
      %55 = dma.done [#allocation7], 32
    $region21: #{tpu_custom_call.1} parent=1 // pred_fallthru
      _
    // Predicated region
    $region22: #{tpu_custom_call.1} parent=1 // pred_check
      _
    $region23: #{tpu_custom_call.1} parent=1 // pred_check_branch
      %57 = sbr.rel (0) target = $region25
    $region24: #{tpu_custom_call.1} parent=1 // pred_region
      %59 = dma.done [#allocation7], 512
    $region25: #{tpu_custom_call.1} parent=1 // pred_fallthru
      _
    %p60 = scmp.eq.s32.totalorder 0, 0
    // Predicated region
    $region26: #{tpu_custom_call.1} parent=1 // pred_check
      %p61 = pneg %p60
    $region27: #{tpu_custom_call.1} parent=1 // pred_check_branch
      %63 = sbr.rel (%p61) target = $region29
    $region28: #{tpu_custom_call.1} parent=1 // pred_region
      %v64 = vld [vmem:[#allocation6] sm:$0x3]
      %vm65 = vcmask 254976
      %66 = vst.msk [vmem:[#allocation2] sm:$0x3] %vm65, %v64
    $region29: #{tpu_custom_call.1} parent=1 // pred_fallthru
      _
    %v67 = vld [vmem:[#allocation8] sm:$0xff]
    %v68 = vld [vmem:[#allocation8 + $0x8] sm:$0xff]
    %v69 = vld [vmem:[#allocation8 + $0x10] sm:$0xff]
    %v70 = vld [vmem:[#allocation8 + $0x18] sm:$0xff]
    %v71 = vld [vmem:[#allocation3] sm:$0xff]
    %v72 = vld [vmem:[#allocation3 + $0x8] sm:$0xff]
    %v73 = vld [vmem:[#allocation2] sm:$0x3]
    %vm74 = vcmask 261120
    %v76 = vsel %vm74, %v73, 0
    %78 = vmatpush.msra.mxu0 0.0
    %79 = vmatpush.msra.mxu0 0.0
    %80 = vmatpush.msra.mxu0 0.0
    %81 = vmatpush.msra.mxu0 0.0
    %82 = vmatpush.msra.mxu0 0.0
    %83 = vmatpush.msra.mxu0 0.0
    %84 = vmatpush.msra.mxu0 0.0
    %85 = vmatpush.msra.mxu0 0.0
    %86 = vmatpush.msra.mxu0 0.0
    %87 = vmatpush.msra.mxu0 0.0
    %88 = vmatpush.msra.mxu0 0.0
    %89 = vmatpush.msra.mxu0 0.0
    %90 = vmatpush.msra.mxu0 %v70
    %91 = vmatpush.msra.mxu0 %v69
    %92 = vmatpush.msra.mxu0 %v68
    %93 = vmatpush.msra.mxu0 %v67
    %94 = vmatmul.f32.gmra.mxu0 %v76
    %v95 = vpop.f32.mrf.mxu0
    %v96 = vadd.f32 0.0, %v95
    %97 = vdwg.mxu0
    %v99 = vrot.slane %v96, 1
    %v102 = vadd.f32 %v71, %v96
    %v103 = vadd.f32 %v72, %v99
    %v104 = vmax.f32 %v102, 0.0
    %v105 = vmax.f32 %v103, 0.0
    %v106 = vrot.slane %v73, 1
    %v109 = vsub.f32 %v104, %v73
    %v110 = vsub.f32 %v105, %v106
    %v111 = vmul.f32 %v109, 0.2
    %v112 = vmul.f32 %v110, 0.2
    %v115 = vrot.slane %v112, 7
    %vm116 = vcmask 1041409
    %v117 = vsel %vm116, %v115, %v111
    %v119 = vadd.f32 %v73, %v117
    %v121 = vsel %vm74, %v119, 0
    %123 = vmatpush.msra.mxu0 0.0
    %124 = vmatpush.msra.mxu0 0.0
    %125 = vmatpush.msra.mxu0 0.0
    %126 = vmatpush.msra.mxu0 0.0
    %127 = vmatpush.msra.mxu0 0.0
    %128 = vmatpush.msra.mxu0 0.0
    %129 = vmatpush.msra.mxu0 0.0
    %130 = vmatpush.msra.mxu0 0.0
    %131 = vmatpush.msra.mxu0 0.0
    %132 = vmatpush.msra.mxu0 0.0
    %133 = vmatpush.msra.mxu0 0.0
    %134 = vmatpush.msra.mxu0 0.0
    %135 = vmatpush.msra.mxu0 %v70
    %136 = vmatpush.msra.mxu0 %v69
    %137 = vmatpush.msra.mxu0 %v68
    %138 = vmatpush.msra.mxu0 %v67
    %139 = vmatmul.f32.gmra.mxu0 %v121
    %v140 = vpop.f32.mrf.mxu0
    %v141 = vadd.f32 0.0, %v140
    %142 = vdwg.mxu0
    %v144 = vrot.slane %v141, 7
    %v147 = vadd.f32 %v71, %v144
    %v148 = vadd.f32 %v72, %v141
    %v149 = vmax.f32 %v147, 0.0
    %v150 = vmax.f32 %v148, 0.0
    %v151 = vrot.slane %v119, 7
    %v154 = vsub.f32 %v149, %v151
    %v155 = vsub.f32 %v150, %v119
    %v156 = vmul.f32 %v154, 0.2
    %v157 = vmul.f32 %v155, 0.2
    %v160 = vrot.slane %v156, 1
    %v161 = vsel %vm116, %v157, %v160
    %v163 = vadd.f32 %v119, %v161
    %v165 = vsel %vm74, %v163, 0
    %167 = vmatpush.msra.mxu0 0.0
    %168 = vmatpush.msra.mxu0 0.0
    %169 = vmatpush.msra.mxu0 0.0
    %170 = vmatpush.msra.mxu0 0.0
    %171 = vmatpush.msra.mxu0 0.0
    %172 = vmatpush.msra.mxu0 0.0
    %173 = vmatpush.msra.mxu0 0.0
    %174 = vmatpush.msra.mxu0 0.0
    %175 = vmatpush.msra.mxu0 0.0
    %176 = vmatpush.msra.mxu0 0.0
    %177 = vmatpush.msra.mxu0 0.0
    %178 = vmatpush.msra.mxu0 0.0
    %179 = vmatpush.msra.mxu0 %v70
    %180 = vmatpush.msra.mxu0 %v69
    %181 = vmatpush.msra.mxu0 %v68
    %182 = vmatpush.msra.mxu0 %v67
    %183 = vmatmul.f32.gmra.mxu0 %v165
    %v184 = vpop.f32.mrf.mxu0
    %v185 = vadd.f32 0.0, %v184
    %186 = vdwg.mxu0
    %v188 = vrot.slane %v185, 6
    %v189 = vrot.slane %v185, 7
    %v192 = vadd.f32 %v71, %v188
    %v193 = vadd.f32 %v72, %v189
    %v194 = vmax.f32 %v192, 0.0
    %v195 = vmax.f32 %v193, 0.0
    %v196 = vrot.slane %v163, 6
    %v197 = vrot.slane %v163, 7
    %v200 = vsub.f32 %v194, %v196
    %v201 = vsub.f32 %v195, %v197
    %v202 = vmul.f32 %v200, 0.2
    %v203 = vmul.f32 %v201, 0.2
    %v206 = vrot.slane %v202, 2
    %v207 = vrot.slane %v203, 1
    %v208 = vsel %vm116, %v207, %v206
    %v210 = vadd.f32 %v163, %v208
    %v212 = vsel %vm74, %v210, 0
    %214 = vmatpush.msra.mxu0 0.0
    %215 = vmatpush.msra.mxu0 0.0
    %216 = vmatpush.msra.mxu0 0.0
    %217 = vmatpush.msra.mxu0 0.0
    %218 = vmatpush.msra.mxu0 0.0
    %219 = vmatpush.msra.mxu0 0.0
    %220 = vmatpush.msra.mxu0 0.0
    %221 = vmatpush.msra.mxu0 0.0
    %222 = vmatpush.msra.mxu0 0.0
    %223 = vmatpush.msra.mxu0 0.0
    %224 = vmatpush.msra.mxu0 0.0
    %225 = vmatpush.msra.mxu0 0.0
    %226 = vmatpush.msra.mxu0 %v70
    %227 = vmatpush.msra.mxu0 %v69
    %228 = vmatpush.msra.mxu0 %v68
    %229 = vmatpush.msra.mxu0 %v67
    %230 = vmatmul.f32.gmra.mxu0 %v212
    %v231 = vpop.f32.mrf.mxu0
    %v232 = vadd.f32 0.0, %v231
    %233 = vdwg.mxu0
    %v235 = vrot.slane %v232, 5
    %v236 = vrot.slane %v232, 6
    %v239 = vadd.f32 %v71, %v235
    %v240 = vadd.f32 %v72, %v236
    %v241 = vmax.f32 %v239, 0.0
    %v242 = vmax.f32 %v240, 0.0
    %v243 = vrot.slane %v210, 5
    %v244 = vrot.slane %v210, 6
    %v247 = vsub.f32 %v241, %v243
    %v248 = vsub.f32 %v242, %v244
    %v249 = vmul.f32 %v247, 0.2
    %v250 = vmul.f32 %v248, 0.2
    %v253 = vrot.slane %v249, 3
    %v254 = vrot.slane %v250, 2
    %v255 = vsel %vm116, %v254, %v253
    %v257 = vadd.f32 %v210, %v255
    %v259 = vsel %vm74, %v257, 0
    %261 = vmatpush.msra.mxu0 0.0
    %262 = vmatpush.msra.mxu0 0.0
    %263 = vmatpush.msra.mxu0 0.0
    %264 = vmatpush.msra.mxu0 0.0
    %265 = vmatpush.msra.mxu0 0.0
    %266 = vmatpush.msra.mxu0 0.0
    %267 = vmatpush.msra.mxu0 0.0
    %268 = vmatpush.msra.mxu0 0.0
    %269 = vmatpush.msra.mxu0 0.0
    %270 = vmatpush.msra.mxu0 0.0
    %271 = vmatpush.msra.mxu0 0.0
    %272 = vmatpush.msra.mxu0 0.0
    %273 = vmatpush.msra.mxu0 %v70
    %274 = vmatpush.msra.mxu0 %v69
    %275 = vmatpush.msra.mxu0 %v68
    %276 = vmatpush.msra.mxu0 %v67
    %277 = vmatmul.f32.gmra.mxu0 %v259
    %v278 = vpop.f32.mrf.mxu0
    %v279 = vadd.f32 0.0, %v278
    %280 = vdwg.mxu0
    %v282 = vrot.slane %v279, 4
    %v283 = vrot.slane %v279, 5
    %v286 = vadd.f32 %v71, %v282
    %v287 = vadd.f32 %v72, %v283
    %v288 = vmax.f32 %v286, 0.0
    %v289 = vmax.f32 %v287, 0.0
    %v290 = vrot.slane %v257, 4
    %v291 = vrot.slane %v257, 5
    %v294 = vsub.f32 %v288, %v290
    %v295 = vsub.f32 %v289, %v291
    %v296 = vmul.f32 %v294, 0.2
    %v297 = vmul.f32 %v295, 0.2
    %v300 = vrot.slane %v296, 4
    %v301 = vrot.slane %v297, 3
    %v302 = vsel %vm116, %v301, %v300
    %v304 = vadd.f32 %v257, %v302
    %v306 = vsel %vm74, %v304, 0
    %308 = vmatpush.msra.mxu0 0.0
    %309 = vmatpush.msra.mxu0 0.0
    %310 = vmatpush.msra.mxu0 0.0
    %311 = vmatpush.msra.mxu0 0.0
    %312 = vmatpush.msra.mxu0 0.0
    %313 = vmatpush.msra.mxu0 0.0
    %314 = vmatpush.msra.mxu0 0.0
    %315 = vmatpush.msra.mxu0 0.0
    %316 = vmatpush.msra.mxu0 0.0
    %317 = vmatpush.msra.mxu0 0.0
    %318 = vmatpush.msra.mxu0 0.0
    %319 = vmatpush.msra.mxu0 0.0
    %320 = vmatpush.msra.mxu0 %v70
    %321 = vmatpush.msra.mxu0 %v69
    %322 = vmatpush.msra.mxu0 %v68
    %323 = vmatpush.msra.mxu0 %v67
    %324 = vmatmul.f32.gmra.mxu0 %v306
    %v325 = vpop.f32.mrf.mxu0
    %v326 = vadd.f32 0.0, %v325
    %327 = vdwg.mxu0
    %v329 = vrot.slane %v326, 3
    %v330 = vrot.slane %v326, 4
    %v333 = vadd.f32 %v71, %v329
    %v334 = vadd.f32 %v72, %v330
    %v335 = vmax.f32 %v333, 0.0
    %v336 = vmax.f32 %v334, 0.0
    %v337 = vrot.slane %v304, 3
    %v338 = vrot.slane %v304, 4
    %v341 = vsub.f32 %v335, %v337
    %v342 = vsub.f32 %v336, %v338
    %v343 = vmul.f32 %v341, 0.2
    %v344 = vmul.f32 %v342, 0.2
    %v347 = vrot.slane %v343, 5
    %v348 = vrot.slane %v344, 4
    %v349 = vsel %vm116, %v348, %v347
    %v351 = vadd.f32 %v304, %v349
    %v353 = vsel %vm74, %v351, 0
    %355 = vmatpush.msra.mxu0 0.0
    %356 = vmatpush.msra.mxu0 0.0
    %357 = vmatpush.msra.mxu0 0.0
    %358 = vmatpush.msra.mxu0 0.0
    %359 = vmatpush.msra.mxu0 0.0
    %360 = vmatpush.msra.mxu0 0.0
    %361 = vmatpush.msra.mxu0 0.0
    %362 = vmatpush.msra.mxu0 0.0
    %363 = vmatpush.msra.mxu0 0.0
    %364 = vmatpush.msra.mxu0 0.0
    %365 = vmatpush.msra.mxu0 0.0
    %366 = vmatpush.msra.mxu0 0.0
    %367 = vmatpush.msra.mxu0 %v70
    %368 = vmatpush.msra.mxu0 %v69
    %369 = vmatpush.msra.mxu0 %v68
    %370 = vmatpush.msra.mxu0 %v67
    %371 = vmatmul.f32.gmra.mxu0 %v353
    %v372 = vpop.f32.mrf.mxu0
    %v373 = vadd.f32 0.0, %v372
    %374 = vdwg.mxu0
    %v376 = vrot.slane %v373, 2
    %v377 = vrot.slane %v373, 3
    %v380 = vadd.f32 %v71, %v376
    %v381 = vadd.f32 %v72, %v377
    %v382 = vmax.f32 %v380, 0.0
    %v383 = vmax.f32 %v381, 0.0
    %v384 = vrot.slane %v351, 2
    %v385 = vrot.slane %v351, 3
    %v388 = vsub.f32 %v382, %v384
    %v389 = vsub.f32 %v383, %v385
    %v390 = vmul.f32 %v388, 0.2
    %v391 = vmul.f32 %v389, 0.2
    %v394 = vrot.slane %v390, 6
    %v395 = vrot.slane %v391, 5
    %v396 = vsel %vm116, %v395, %v394
    %v398 = vadd.f32 %v351, %v396
    %v400 = vsel %vm74, %v398, 0
    %402 = vmatpush.msra.mxu0 0.0
    %403 = vmatpush.msra.mxu0 0.0
    %404 = vmatpush.msra.mxu0 0.0
    %405 = vmatpush.msra.mxu0 0.0
    %406 = vmatpush.msra.mxu0 0.0
    %407 = vmatpush.msra.mxu0 0.0
    %408 = vmatpush.msra.mxu0 0.0
    %409 = vmatpush.msra.mxu0 0.0
    %410 = vmatpush.msra.mxu0 0.0
    %411 = vmatpush.msra.mxu0 0.0
    %412 = vmatpush.msra.mxu0 0.0
    %413 = vmatpush.msra.mxu0 0.0
    %414 = vmatpush.msra.mxu0 %v70
    %415 = vmatpush.msra.mxu0 %v69
    %416 = vmatpush.msra.mxu0 %v68
    %417 = vmatpush.msra.mxu0 %v67
    %418 = vmatmul.f32.gmra.mxu0 %v400
    %v419 = vpop.f32.mrf.mxu0
    %v420 = vadd.f32 0.0, %v419
    %421 = vdwg.mxu0
    %v423 = vrot.slane %v420, 1
    %v424 = vrot.slane %v420, 2
    %v427 = vadd.f32 %v71, %v423
    %v428 = vadd.f32 %v72, %v424
    %v429 = vmax.f32 %v427, 0.0
    %v430 = vmax.f32 %v428, 0.0
    %v431 = vrot.slane %v398, 1
    %v432 = vrot.slane %v398, 2
    %v435 = vsub.f32 %v429, %v431
    %v436 = vsub.f32 %v430, %v432
    %v437 = vmul.f32 %v435, 0.2
    %v438 = vmul.f32 %v436, 0.2
    %v441 = vrot.slane %v437, 7
    %v442 = vrot.slane %v438, 6
    %v443 = vsel %vm116, %v442, %v441
    %v445 = vadd.f32 %v398, %v443
    %v446 = vrot.slane %v119, 1
    %v448 = vrot.slane %v163, 1
    %v449 = vrot.slane %v210, 1
    %v450 = vrot.slane %v257, 1
    %v451 = vrot.slane %v304, 1
    %v452 = vrot.slane %v351, 1
    %v454 = vrot.slane %v445, 1
    %v455 = vperm.slane %v163, 0
    %v456 = vperm.slane %v448, 0
    %v459 = vperm.slane %v210, 0
    %v460 = vperm.slane %v449, 0
    %v463 = vperm.slane %v257, 0
    %v464 = vperm.slane %v450, 0
    %v467 = vperm.slane %v304, 0
    %v468 = vperm.slane %v451, 0
    %v471 = vperm.slane %v351, 0
    %v472 = vperm.slane %v452, 0
    %v475 = vperm.slane %v398, 0
    %v476 = vperm.slane %v431, 0
    %v479 = vperm.slane %v445, 0
    %v480 = vperm.slane %v454, 0
    %vm483 = vcmask 1040384
    %v484 = vsel %vm483, %v119, %v455
    %v485 = vsel %vm483, %v446, %v456
    %vm486 = vcmask 1041408
    %v487 = vsel %vm486, %v484, %v459
    %v488 = vsel %vm486, %v485, %v460
    %vm489 = vcmask 1042432
    %v490 = vsel %vm489, %v487, %v463
    %v491 = vsel %vm489, %v488, %v464
    %vm492 = vcmask 1043456
    %v493 = vsel %vm492, %v490, %v467
    %v494 = vsel %vm492, %v491, %v468
    %vm495 = vcmask 1044480
    %v496 = vsel %vm495, %v493, %v471
    %v497 = vsel %vm495, %v494, %v472
    %vm498 = vcmask 1045504
    %v499 = vsel %vm498, %v496, %v475
    %v500 = vsel %vm498, %v497, %v476
    %vm501 = vcmask 1046528
    %v502 = vsel %vm501, %v499, %v479
    %v503 = vsel %vm501, %v500, %v480
    %504 = vst.msk [vmem:[#allocation9] sm:$0xff] %vm74, %v502
    %505 = vst.msk [vmem:[#allocation9 + $0x8] sm:$0xff] %vm74, %v503
    %vm506 = vcmask 254976
    %507 = vst.msk [vmem:[#allocation2] sm:$0x3] %vm506, %v445
    // Predicated region
    $region30: #{tpu_custom_call.1} parent=1 // pred_check
      _
    $region31: #{tpu_custom_call.1} parent=1 // pred_check_branch
      %509 = sbr.rel (0) target = $region33
    $region32: #{tpu_custom_call.1} parent=1 // pred_region
      %511 = vsyncadd [#allocation5], 0
      %s512 = sshll.u32 [#allocation9], 4
      %s513 = int_to_ptr.vmem [resolvable:$true] %s512
      %s514 = sshll.u32 %s3, 4
      %s515 = int_to_ptr.hbm [resolvable:$true] %s514
      %520 = dma.vmem_to_hbm [thread:$0]  %s513, 256, %s515, [#allocation5], 128, 128, 8
    $region33: #{tpu_custom_call.1} parent=1 // pred_fallthru
      _
    // Predicated region
    $region34: #{tpu_custom_call.1} parent=1 // pred_check
      _
    $region35: #{tpu_custom_call.1} parent=1 // pred_check_branch
      %522 = sbr.rel (0) target = $region37
    $region36: #{tpu_custom_call.1} parent=1 // pred_region
      %524 = dma.done [#allocation5], 256
    $region37: #{tpu_custom_call.1} parent=1 // pred_fallthru
      _
    %525 = vsyncpa [#allocation4], 1
    %526 = vsyncpa [#allocation7], 1
    %527 = vsyncpa [#allocation5], 1

</llo_original>
